<compile_context>
chip_gen: v7x
topology: tpu7x:2x2x1
jax: 0.10.0
libtpu: 0.0.40
codegen_flags: <defaults>
</compile_context>

<pallas_src>
import functools
import math

import jax
import jax.numpy as jnp
from jax.experimental import pallas as pl
from jax.experimental.pallas import tpu as pltpu


def _round_up(x: int, m: int) -> int:
    return ((x + m - 1) // m) * m


def _soft_ce_kernel(logits_ref, target_ref, out_ref, *,
                    smooth_val: float, coef_t: float, k_const: float,
                    n_valid: int, tile_n: int):
    x = logits_ref[...].astype(jnp.float32)          # (tile_n, C)
    t = target_ref[...]                              # (tile_n, 1) int32
    tn, c = x.shape

    # --- log-softmax statistics along the class axis (axis=1) ---
    m = jnp.max(x, axis=1, keepdims=True)
    z = x - m
    lse = jnp.log(jnp.sum(jnp.exp(z), axis=1, keepdims=True))
    # sum_c logp = sum_c (z - lse) = sum_c z - C * lse  (reuses the same z)
    sum_logp = jnp.sum(z, axis=1, keepdims=True) - jnp.float32(c) * lse

    # logp at the target index via a lane-iota mask (single masked row reduce).
    col = jax.lax.broadcasted_iota(jnp.int32, (tn, c), 1)
    z_t = jnp.sum(jnp.where(col == t, z, jnp.float32(0.0)), axis=1, keepdims=True)
    logp_t = z_t - lse

    # Closed-form smoothed-KL per row.
    row_loss = (jnp.float32(k_const)
                - jnp.float32(smooth_val) * sum_logp
                - jnp.float32(coef_t) * logp_t)       # (tile_n, 1)

    # Mask rows that are padding (global row index >= true batch size).
    rows = (pl.program_id(0) * tile_n
            + jax.lax.broadcasted_iota(jnp.int32, (tn, 1), 0))
    valid = rows < n_valid
    out_ref[0, 0] = jnp.sum(jnp.where(valid, row_loss, jnp.float32(0.0)))


def soft_ce_loss(logits, target, num_class, *,
                 label_smooth: float = 0.0, reduction: str = "batchmean",
                 tile_n: int | None = None):
    """Pallas implementation of SoftCELoss.forward.

    logits: (N, C) float array (f32 or bf16), target: (N,) integer labels.
    Returns a scalar float32 loss.
    """
    assert 0.0 <= label_smooth <= 1.0
    N, C = logits.shape
    assert num_class == C, "kernel assumes num_class == logits.shape[1]"
    if reduction not in ("batchmean", "mean", "sum"):
        # TODO(synk): reduction='none' (elementwise KLDiv map) not implemented.
        raise ValueError(f"unsupported reduction: {reduction!r}")

    ls = float(label_smooth)
    if ls > 0.0:
        assert num_class > 1, "label smoothing requires num_class > 1"
    sv = ls / (num_class - 1) if num_class > 1 else 0.0
    # K_const = (1-ls)*log(1-ls) + (C-1)*sv*log(sv), with 0*log0 := 0.
    k_const = 0.0
    if 1.0 - ls > 0.0:
        k_const += (1.0 - ls) * math.log(1.0 - ls)
    if sv > 0.0:
        k_const += (num_class - 1) * sv * math.log(sv)
    coef_t = 1.0 - ls - sv

    itemsize = jnp.dtype(logits.dtype).itemsize
    # Sublane multiple: 8 for 32-bit, 16 for bf16, 32 for 8-bit.
    sub = 8 if itemsize >= 4 else (32 // itemsize)

    if tile_n is None:
        # Cap each (tile_n, C) logits tile at ~4 MiB so two inputs x double
        # buffering fit comfortably in scoped VMEM on v5e/v6e/v7x.
        cap = max(sub, ((4 << 20) // max(1, C * itemsize)) // sub * sub)
        tile_n = min(_round_up(N, sub), cap)
    tile_n = max(sub, _round_up(int(tile_n), sub))

    n_pad = _round_up(N, tile_n)
    target_2d = target.astype(jnp.int32).reshape(N, 1)
    if n_pad != N:
        logits = jnp.pad(logits, ((0, n_pad - N), (0, 0)))
        target_2d = jnp.pad(target_2d, ((0, n_pad - N), (0, 0)))
    num_tiles = n_pad // tile_n

    kernel = functools.partial(
        _soft_ce_kernel,
        smooth_val=sv, coef_t=coef_t, k_const=k_const,
        n_valid=N, tile_n=tile_n)

    partials = pl.pallas_call(
        kernel,
        out_shape=jax.ShapeDtypeStruct((num_tiles, 1), jnp.float32),
        grid=(num_tiles,),
        in_specs=[
            pl.BlockSpec((tile_n, C), lambda i: (i, 0)),   # logits tile (VMEM)
            pl.BlockSpec((tile_n, 1), lambda i: (i, 0)),   # target tile (VMEM)
        ],
        out_specs=pl.BlockSpec((1, 1), lambda i: (i, 0),
                               memory_space=pltpu.MemorySpace.SMEM),
        compiler_params=pltpu.CompilerParams(
            dimension_semantics=("parallel",)),
    )(logits, target_2d)

    total = jnp.sum(partials)
    if reduction == "batchmean":
        return total / jnp.float32(N)     # true global N, not block-local
    if reduction == "mean":
        return total / jnp.float32(N * C)
    return total                          # 'sum'


def _soft_ce_ref(logits, target, num_class, label_smooth=0.0, reduction="batchmean"):
    """Pure-JAX reference mirroring the PyTorch module."""
    N, C = logits.shape
    one_hot = jnp.full((N, C), label_smooth / (num_class - 1) if num_class > 1 else 0.0,
                       dtype=jnp.float32)
    one_hot = one_hot.at[jnp.arange(N), target].set(1.0 - label_smooth)
    logp = jax.nn.log_softmax(logits.astype(jnp.float32), axis=1)
    kl = jnp.where(one_hot > 0,
                   one_hot * (jnp.log(jnp.where(one_hot > 0, one_hot, 1.0)) - logp),
                   0.0)
    total = jnp.sum(kl)
    if reduction == "batchmean":
        total = total / N
    elif reduction == "mean":
        total = total / (N * C)
    return total


if __name__ == "__main__":
    key = jax.random.PRNGKey(0)
    k1, k2, k3, k4 = jax.random.split(key, 4)

    # Case 1: batch=8, num_classes=32, label smoothing, batchmean (module default).
    N1, C1, ls1 = 8, 32, 0.1
    logits1 = jax.random.normal(k1, (N1, C1), dtype=jnp.float32)
    target1 = jax.random.randint(k2, (N1,), 0, C1, dtype=jnp.int32)
    out1 = jax.block_until_ready(
        soft_ce_loss(logits1, target1, C1, label_smooth=ls1, reduction="batchmean"))
    ref1 = _soft_ce_ref(logits1, target1, C1, label_smooth=ls1, reduction="batchmean")
    assert jnp.allclose(out1, ref1, rtol=1e-5, atol=1e-5), (out1, ref1)

    # Case 2: batch not a multiple of the tile (exercises padding + multi-tile grid),
    # label_smooth=0 -> plain cross-entropy path.
    N2, C2, ls2 = 20, 32, 0.0
    logits2 = jax.random.normal(k3, (N2, C2), dtype=jnp.float32)
    target2 = jax.random.randint(k4, (N2,), 0, C2, dtype=jnp.int32)
    out2 = jax.block_until_ready(
        soft_ce_loss(logits2, target2, C2, label_smooth=ls2,
                     reduction="batchmean", tile_n=8))
    ref2 = _soft_ce_ref(logits2, target2, C2, label_smooth=ls2, reduction="batchmean")
    assert jnp.allclose(out2, ref2, rtol=1e-5, atol=1e-5), (out2, ref2)

    print("KERNEL_OK")
</pallas_src>

<mosaic_0001>
module attributes {stable_mosaic.version = 11 : i64} {
  func.func @_soft_ce_kernel(%arg0: i32, %arg1: memref<8x32xf32, #tpu.memory_space<vmem>>, %arg2: memref<8x1xi32, #tpu.memory_space<vmem>>, %arg3: memref<1x1xf32, #tpu.memory_space<smem>>) attributes {dimension_semantics = [#tpu.dimension_semantics<parallel>], iteration_bounds = array<i64: 1>, scalar_prefetch = 0 : i64, scratch_operands = 0 : i64, tpu.core_type = #tpu.core_type<tc>, window_params = [{transform_indices = @transform_0, window_bounds = array<i64: 8, 32>}, {transform_indices = @transform_1, window_bounds = array<i64: 8, 1>}, {transform_indices = @transform_2, window_bounds = array<i64: 1, 1>}]} {
    %c0 = arith.constant 0 : index
    %c0_0 = arith.constant 0 : index
    %0 = vector.load %arg1[%c0, %c0_0] : memref<8x32xf32, #tpu.memory_space<vmem>>, vector<8x32xf32>
    %c0_1 = arith.constant 0 : index
    %c0_2 = arith.constant 0 : index
    %1 = vector.load %arg2[%c0_1, %c0_2] : memref<8x1xi32, #tpu.memory_space<vmem>>, vector<8x1xi32>
    %cst = arith.constant dense<0xFF800000> : vector<8xf32>
    %2 = vector.multi_reduction <maximumf>, %0, %cst [1] : vector<8x32xf32> to vector<8xf32>
    %3 = vector.shape_cast %2 : vector<8xf32> to vector<8x1xf32>
    %4 = vector.broadcast %3 : vector<8x1xf32> to vector<8x32xf32>
    %5 = arith.subf %0, %4 : vector<8x32xf32>
    %6 = math.exp %5 : vector<8x32xf32>
    %cst_3 = arith.constant dense<0.000000e+00> : vector<8xf32>
    %7 = vector.multi_reduction <add>, %6, %cst_3 [1] : vector<8x32xf32> to vector<8xf32>
    %8 = vector.shape_cast %7 : vector<8xf32> to vector<8x1xf32>
    %9 = math.log %8 : vector<8x1xf32>
    %cst_4 = arith.constant dense<0.000000e+00> : vector<8xf32>
    %10 = vector.multi_reduction <add>, %5, %cst_4 [1] : vector<8x32xf32> to vector<8xf32>
    %11 = vector.shape_cast %10 : vector<8xf32> to vector<8x1xf32>
    %cst_5 = arith.constant 3.200000e+01 : f32
    %12 = vector.broadcast %cst_5 : f32 to vector<8x1xf32>
    %13 = arith.mulf %12, %9 : vector<8x1xf32>
    %14 = arith.subf %11, %13 : vector<8x1xf32>
    %15 = tpu.iota {dimensions = array<i32: 1>} : vector<8x32xi32>
    %16 = vector.broadcast %1 : vector<8x1xi32> to vector<8x32xi32>
    %17 = arith.cmpi eq, %15, %16 : vector<8x32xi32>
    %cst_6 = arith.constant 0.000000e+00 : f32
    %18 = vector.broadcast %cst_6 : f32 to vector<8x32xf32>
    %19 = arith.select %17, %5, %18 : vector<8x32xi1>, vector<8x32xf32>
    %cst_7 = arith.constant dense<0.000000e+00> : vector<8xf32>
    %20 = vector.multi_reduction <add>, %19, %cst_7 [1] : vector<8x32xf32> to vector<8xf32>
    %21 = vector.shape_cast %20 : vector<8xf32> to vector<8x1xf32>
    %22 = arith.subf %21, %9 : vector<8x1xf32>
    %cst_8 = arith.constant 0.0032258064 : f32
    %23 = vector.broadcast %cst_8 : f32 to vector<8x1xf32>
    %24 = arith.mulf %23, %14 : vector<8x1xf32>
    %cst_9 = arith.constant -0.668481708 : f32
    %25 = vector.broadcast %cst_9 : f32 to vector<8x1xf32>
    %26 = arith.subf %25, %24 : vector<8x1xf32>
    %cst_10 = arith.constant 0.896774172 : f32
    %27 = vector.broadcast %cst_10 : f32 to vector<8x1xf32>
    %28 = arith.mulf %27, %22 : vector<8x1xf32>
    %29 = arith.subf %26, %28 : vector<8x1xf32>
    %c8_i32 = arith.constant 8 : i32
    %30 = arith.muli %arg0, %c8_i32 : i32
    %31 = tpu.iota {dimensions = array<i32: 0>} : vector<8x1xi32>
    %32 = vector.broadcast %30 : i32 to vector<8x1xi32>
    %33 = arith.addi %32, %31 : vector<8x1xi32>
    %c8_i32_11 = arith.constant 8 : i32
    %34 = vector.broadcast %c8_i32_11 : i32 to vector<8x1xi32>
    %35 = arith.cmpi slt, %33, %34 : vector<8x1xi32>
    %cst_12 = arith.constant 0.000000e+00 : f32
    %36 = vector.broadcast %cst_12 : f32 to vector<8x1xf32>
    %37 = arith.select %35, %29, %36 : vector<8x1xi1>, vector<8x1xf32>
    %38 = vector.shape_cast %37 : vector<8x1xf32> to vector<1x8x1xf32>
    %cst_13 = arith.constant dense<0.000000e+00> : vector<1xf32>
    %39 = vector.multi_reduction <add>, %38, %cst_13 [1, 2] : vector<1x8x1xf32> to vector<1xf32>
    %40 = vector.shape_cast %39 : vector<1xf32> to vector<1x1x1xf32>
    %41 = vector.extract %40[0, 0, 0] : f32 from vector<1x1x1xf32>
    %c0_14 = arith.constant 0 : index
    %c0_15 = arith.constant 0 : index
    %42 = memref.load %arg3[%c0_14, %c0_15] : memref<1x1xf32, #tpu.memory_space<smem>>
    memref.store %41, %arg3[%c0_14, %c0_15] : memref<1x1xf32, #tpu.memory_space<smem>>
    return
  }
  func.func @transform_0(%arg0: i32) -> (i32, i32) {
    %c0_i32 = arith.constant 0 : i32
    %c0_i32_0 = arith.constant 0 : i32
    return %arg0, %c0_i32 : i32, i32
  }
  func.func @transform_1(%arg0: i32) -> (i32, i32) {
    %c0_i32 = arith.constant 0 : i32
    %c0_i32_0 = arith.constant 0 : i32
    return %arg0, %c0_i32 : i32, i32
  }
  func.func @transform_2(%arg0: i32) -> (i32, i32) {
    %c0_i32 = arith.constant 0 : i32
    %c0_i32_0 = arith.constant 0 : i32
    return %arg0, %c0_i32 : i32, i32
  }
}

</mosaic_0001>

<llo_original>
// kernel: tpu_custom_call.1
$region0: #{tpu_custom_call.1}
  #allocation0 [shape = 'u32[]', space=smem, size = 0x4, offset = 0x4, fixed_abs, tag = 'smem constant byte address 0x4 - core index']
  #allocation1 [shape = 'u32[144,128]{1,0:T(1,128)}', space=vmem, size = 0x12000, scoped, tag = 'internal scratch']
  %s0 = inlined_call_operand.vmem [shape: f32[8,32], index: 0, kind: input, shape index: {}]
  %s1 = inlined_call_operand.vmem [shape: s32[8,1], index: 1, kind: input, shape index: {}]
  %s2 = inlined_call_operand.hbm [shape: f32[1,1], index: 2, kind: output, shape index: {}]
  %s3 = sld [smem:[#allocation0]]
  $region18: #{tpu_custom_call.1} parent=0
    _
  %s5 = ssub.s32 1, %s3
  %s6 = scalar_select 0, %s5, %s3
  $region1: #{tpu_custom_call.1} parent=0
    #allocation2 [shape = 'u8[512]{0}', space=smem, size = 0x200, scoped, tag = 'output window, operand 0, single buffered']
    #allocation3 [shape = 's32[1]{0}', space=sflag, size = 0x4, scoped, tag = 'scoped memory for tpu_custom_call.1']
    %7 = vsyncpa [#allocation3], 0
    // Predicated region
    $region2: #{tpu_custom_call.1} parent=1 // pred_check
      _
    $region3: #{tpu_custom_call.1} parent=1 // pred_check_branch
      %9 = sbr.rel (0) target = $region5
    $region4: #{tpu_custom_call.1} parent=1 // pred_region
      _
    $region5: #{tpu_custom_call.1} parent=1 // pred_fallthru
      _
    // Predicated region
    $region6: #{tpu_custom_call.1} parent=1 // pred_check
      _
    $region7: #{tpu_custom_call.1} parent=1 // pred_check_branch
      %11 = sbr.rel (0) target = $region9
    $region8: #{tpu_custom_call.1} parent=1 // pred_region
      _
    $region9: #{tpu_custom_call.1} parent=1 // pred_fallthru
      _
    %v12 = vld [vmem:[%s0] sm:$0xff]
    %v13 = vld [vmem:[%s1] sm:$0xff]
    %vm14 = vcmask 261120
    %v15 = vsel %vm14, %v12, -inf
    %16 = vmax.xlane.f32.xlu0 %v15
    %v17 = vpop.xlane.xlu0 %16
    %v18 = vsub.f32 %v12, %v17
    %v19 = vmul.f32 %v18, 1.442695
    %v20 = vpow.pop %v19
    %v21 = vsel %vm14, %v20, 0.0
    %22 = vadd.xlane.f32.xlu0 %v21
    %v23 = vpop.xlane.xlu0 %22
    %v24 = vlog2.pop %v23
    %v25 = vmul.f32 %v24, 0.6931472
    %v26 = vsel %vm14, %v18, 0.0
    %27 = vadd.xlane.f32.xlu0 %v26
    %v28 = vpop.xlane.xlu0 %27
    %v29 = vmul.f32 %v25, 32.0
    %v30 = vsub.f32 %v28, %v29
    %v31 = vlaneseq
    %v32 = vand.u32 %v31, 127
    %33 = vset.pattern.permute.xlu0 0
    %34 = vperm.xlu0 %33, %v13
    %v35 = vpop.permute.xlu0 %34
    %vm36 = vcmp.eq.s32.totalorder %v32, %v35
    %v37 = vsel %vm36, %v18, 0.0
    %v38 = vsel %vm14, %v37, 0.0
    %39 = vadd.xlane.f32.xlu0 %v38
    %v40 = vpop.xlane.xlu0 %39
    %v41 = vsub.f32 %v40, %v25
    %v42 = vmul.f32 %v30, 0.0032258064
    %v43 = vsub.f32 -0.6684817, %v42
    %v44 = vmul.f32 %v41, 0.8967742
    %v45 = vsub.f32 %v43, %v44
    %s46 = smul.u32 0, 8
    %v47 = vlaneseq
    %v48 = vshrl.u32 %v47, 7
    %v49 = vstv %s46
    %v50 = vadd.s32 %v49, %v48
    %vm51 = vcmp.lt.s32.totalorder %v50, 8
    %v52 = vsel %vm51, %v45, 0.0
    %vm53 = vcmask 7168
    %v54 = vsel %vm53, %v52, 0.0
    %55 = vadd.xlane.f32.xlu0 %v54
    %v56 = vpop.xlane.xlu0 %55
    %v57 = vrot.slane %v56, 4
    %v58 = vadd.f32 %v56, %v57
    %v59 = vrot.slane %v58, 2
    %v60 = vadd.f32 %v58, %v59
    %v61 = vrot.slane %v60, 1
    %v62 = vadd.f32 %v60, %v61
    %s63 = vtos %v62
    %s64 = scalar_lea.smem [#allocation2], 0
    %65 = sst [smem:[%s64]] %s63
    // Predicated region
    $region10: #{tpu_custom_call.1} parent=1 // pred_check
      _
    $region11: #{tpu_custom_call.1} parent=1 // pred_check_branch
      %67 = sbr.rel (0) target = $region13
    $region12: #{tpu_custom_call.1} parent=1 // pred_region
      %s69 = ssub.s32 16, 16
      %70 = vsyncadd [#allocation3], %s69
      %73 = dma.smem_to_hbm [#allocation2], 16, %s2, [#allocation3]
    $region13: #{tpu_custom_call.1} parent=1 // pred_fallthru
      _
    // Predicated region
    $region14: #{tpu_custom_call.1} parent=1 // pred_check
      _
    $region15: #{tpu_custom_call.1} parent=1 // pred_check_branch
      %75 = sbr.rel (0) target = $region17
    $region16: #{tpu_custom_call.1} parent=1 // pred_region
      %76 = dma.done [#allocation3], 16
    $region17: #{tpu_custom_call.1} parent=1 // pred_fallthru
      _
    %77 = sfence
    %78 = vsyncpa [#allocation3], 1

</llo_original>
